<compile_context>
chip_gen: v5e
topology: v5e:2x2
jax: 0.10.0
libtpu: 0.0.40
codegen_flags: <defaults>
</compile_context>

<pallas_src>
import math

import jax
import jax.numpy as jnp
from jax.experimental import pallas as pl
from jax.experimental.pallas import tpu as pltpu


def _round_up(x, m):
    return ((x + m - 1) // m) * m


def _device_kind():
    try:
        return jax.devices()[0].device_kind.lower()
    except Exception:
        return ""


def _default_group():
    # 128x128 MXUs (v2..v5): keep the packed width at 128 lanes (G*K = 128).
    # 256x256 MXUs (v6e, v7x): pack 256 lanes so one MXU pass is fully used.
    kind = _device_kind()
    if any(v in kind for v in ("v2", "v3", "v4", "v5")):
        return 4
    return 8


def _is_multi_tc():
    # Only v7x has 2 TensorCores per chip; splitting a single-step problem in
    # two only pays there (pure extra overhead on v5e/v6e).
    return "7" in _device_kind()


def _make_kernel(approximate_gelu):
    def kernel(x_ref, e_ref, w1_ref, b1_ref, w2_ref, b2_ref, out_ref):
        # x_ref : (tm, G+1) packed pair values; last column is a constant 1.0
        #         so the (-mean * sqrt(0.5)/std) shift rides inside the matmul.
        # e_ref : (G+1, G*K) expansion matrix (sqrt(0.5)/std + mean folded in),
        #         so u = (x - mean) * sqrt(0.5)/std in a single MXU pass.
        u = jnp.dot(x_ref[...], e_ref[...], preferred_element_type=jnp.float32)
        phi = jnp.exp(-(u * u))           # == exp(-0.5*((x-mean)/std)^2)

        # linear_1 (block-diagonal; coef = -1/(sqrt(2*pi)*std) folded into rows)
        w1 = w1_ref[...]
        h = jnp.dot(phi.astype(w1.dtype), w1,
                    preferred_element_type=jnp.float32) + b1_ref[...]

        if approximate_gelu:
            # tanh GELU (EUP slot). Numerics change vs torch's exact erf GELU;
            # only enabled explicitly.
            h = jax.nn.gelu(h, approximate=True)
        else:
            # exact erf GELU == torch.nn.functional.gelu default
            h = 0.5 * h * (1.0 + jax.lax.erf(h * 0.7071067811865476))

        # linear_2 (block-diagonal) -> (tm, G*num_heads)
        w2 = w2_ref[...]
        o = jnp.dot(h.astype(w2.dtype), w2,
                    preferred_element_type=jnp.float32) + b2_ref[...]
        out_ref[...] = o.astype(out_ref.dtype)

    return kernel


def _prepare_constants(params, G, *, weights_dtype=jnp.float32):
    """Build expansion matrix + block-diagonal weights.

    NOTE: in a real model this runs once per parameter update and should be
    cached outside the per-forward hot path.
    """
    f32 = jnp.float32
    K = params["means"].shape[-1]

    mean = params["means"].reshape(-1).astype(f32)            # (K,)
    std = params["stds"].reshape(-1).astype(f32)              # (K,) unguarded, as in torch
    inv_std = 1.0 / std
    scale = inv_std * math.sqrt(0.5)                          # sqrt(0.5)/std
    coef = (-1.0 / math.sqrt(2.0 * math.pi)) * inv_std        # -1/(sqrt(2*pi)*std)

    eye_g = jnp.eye(G, dtype=f32)

    # Expansion matrix E: block-diagonal scale rows + a bias row (-mean*scale),
    # consumed as u = [x, 1] @ E.
    e_top = jnp.kron(eye_g, scale.reshape(1, K))              # (G, G*K)
    e_bias = jnp.tile(-mean * scale, G).reshape(1, G * K)     # (1, G*K)
    e_mat = jnp.concatenate([e_top, e_bias], axis=0)          # (G+1, G*K)

    w1 = params["w1"].astype(f32) * coef[:, None]             # coef folded into W1 rows
    b1 = params["b1"].reshape(-1).astype(f32)
    w2 = params["w2"].astype(f32)
    b2 = params["b2"].reshape(-1).astype(f32)
    H, NH = w1.shape[-1], w2.shape[-1]

    w1_bd = jnp.kron(eye_g, w1).astype(weights_dtype)         # (G*K, G*H)
    w2_bd = jnp.kron(eye_g, w2).astype(weights_dtype)         # (G*H, G*NH)
    b1_t = jnp.tile(b1, G).reshape(1, G * H)
    b2_t = jnp.tile(b2, G).reshape(1, G * NH)
    return e_mat, w1_bd, b1_t, w2_bd, b2_t


def distance_encoding(distances, edge_type, params, *, tile_m=4096, group=None,
                      approximate_gelu=False, matmul_dtype=jnp.float32):
    """distances: (N, N) float, edge_type: (N, N) int -> (N, N, num_heads)."""
    N = distances.shape[0]
    K = params["means"].shape[-1]
    H = params["w1"].shape[-1]
    NH = params["w2"].shape[-1]
    G = _default_group() if group is None else group
    f32 = jnp.float32

    # --- plain-JAX glue: embedding gathers fused with x = gamma*d - beta -----
    # TODO(synk): the tiny nn.Embedding lookups stay outside the kernel (gather
    # glue); on v5e they could be folded in as a one-hot select to avoid one
    # round trip of the packed x array through HBM.
    gam = params["gammas"][edge_type, 0].astype(f32)          # (N, N)
    bet = params["betas"][edge_type, 0].astype(f32)           # (N, N)
    x = (gam * distances.astype(f32) - bet).reshape(-1)       # (M,)

    M = N * N
    M_super = -(-M // G)                                      # ceil(M / G)

    # Tile sizing: as large as VMEM comfortably allows, sublane-aligned; split
    # a single-step problem in two only on multi-TC chips (v7x).
    tm = _round_up(min(tile_m, _round_up(M_super, 8)), 8)
    if _is_multi_tc() and M_super > 8 and -(-M_super // tm) < 2:
        tm = _round_up(-(-M_super // 2), 8)
    M_super_pad = _round_up(M_super, tm)

    pad = M_super_pad * G - M
    if pad:
        x = jnp.pad(x, (0, pad))
    x = x.reshape(M_super_pad, G)
    # constant-1 column carries the -mean/std shift through the expansion matmul
    x = jnp.pad(x, ((0, 0), (0, 1)), constant_values=1.0)     # (M_super_pad, G+1)

    e_mat, w1_bd, b1_t, w2_bd, b2_t = _prepare_constants(
        params, G, weights_dtype=matmul_dtype)

    grid = (M_super_pad // tm,)
    kernel = _make_kernel(approximate_gelu)

    GK, GH, GNH = G * K, G * H, G * NH
    flops = 2 * M_super_pad * ((G + 1) * GK + GK * GH + GH * GNH)
    transcendentals = M_super_pad * (GK + GH)
    bytes_accessed = 4 * (M_super_pad * (G + 1) + M_super_pad * GNH
                          + (G + 1) * GK + GK * GH + GH * GNH + GH + GNH)

    out = pl.pallas_call(
        kernel,
        out_shape=jax.ShapeDtypeStruct((M_super_pad, GNH), f32),
        grid_spec=pltpu.PrefetchScalarGridSpec(
            num_scalar_prefetch=0,
            grid=grid,
            in_specs=[
                pl.BlockSpec((tm, G + 1), lambda i: (i, 0)),   # packed x (+1 col)
                pl.BlockSpec((G + 1, GK), lambda i: (0, 0)),   # expansion matrix
                pl.BlockSpec((GK, GH), lambda i: (0, 0)),      # block-diag W1*coef
                pl.BlockSpec((1, GH), lambda i: (0, 0)),       # b1 (tiled)
                pl.BlockSpec((GH, GNH), lambda i: (0, 0)),     # block-diag W2
                pl.BlockSpec((1, GNH), lambda i: (0, 0)),      # b2 (tiled)
            ],
            out_specs=pl.BlockSpec((tm, GNH), lambda i: (i, 0)),
        ),
        compiler_params=pltpu.CompilerParams(
            dimension_semantics=("parallel",),
            vmem_limit_bytes=48 * 1024 * 1024),
        cost_estimate=pl.CostEstimate(
            flops=int(flops),
            transcendentals=int(transcendentals),
            bytes_accessed=int(bytes_accessed)),
    )(x, e_mat, w1_bd, b1_t, w2_bd, b2_t)

    # Pair p = super_row*G + g unpacks with pure row-major reshapes.
    return out.reshape(M_super_pad * G, NH)[:M].reshape(N, N, NH)


if __name__ == "__main__":
    # Module config (small, consistent with DistanceEncoding.__init__)
    num_heads, K, num_edge_types, hidden_dim = 8, 32, 5, 32
    N = 8  # num_nodes

    key = jax.random.PRNGKey(0)
    ks = jax.random.split(key, 10)
    params = {
        "means":  jax.random.normal(ks[0], (1, K), jnp.float32),
        # keep stds away from 0 so the gaussian kernel is numerically sane
        "stds":   jax.random.uniform(ks[1], (1, K), jnp.float32, 0.5, 2.0),
        # nn.Embedding(num_edge_types, 1, padding_idx=0): row 0 is zeros
        "gammas": jax.random.normal(ks[2], (num_edge_types, 1), jnp.float32).at[0].set(0.0),
        "betas":  jax.random.normal(ks[3], (num_edge_types, 1), jnp.float32).at[0].set(0.0),
        # Linear weights stored transposed (in, out) so kernel does x @ W + b
        "w1": jax.random.normal(ks[4], (K, hidden_dim), jnp.float32) / jnp.sqrt(K),
        "b1": jax.random.normal(ks[5], (hidden_dim,), jnp.float32) * 0.01,
        "w2": jax.random.normal(ks[6], (hidden_dim, num_heads), jnp.float32) / jnp.sqrt(hidden_dim),
        "b2": jax.random.normal(ks[7], (num_heads,), jnp.float32) * 0.01,
    }

    distances = jax.random.uniform(ks[8], (N, N), jnp.float32, 0.0, 5.0)
    edge_type = jax.random.randint(ks[9], (N, N), 0, num_edge_types)

    out = jax.block_until_ready(distance_encoding(distances, edge_type, params))

    # Pure-JAX reference (mirrors the PyTorch forward exactly)
    gam = params["gammas"][edge_type, 0]
    bet = params["betas"][edge_type, 0]
    x = (gam * distances - bet)[..., None]                       # (N, N, 1)
    mean = params["means"].reshape(1, 1, K)
    std = params["stds"].reshape(1, 1, K)
    phi = jnp.exp(-0.5 * ((x - mean) / std) ** 2) * (-1.0 / (jnp.sqrt(2.0 * jnp.pi) * std))
    h = phi @ params["w1"] + params["b1"]
    h = 0.5 * h * (1.0 + jax.lax.erf(h / jnp.sqrt(2.0)))
    ref = h @ params["w2"] + params["b2"]

    assert out.shape == (N, N, num_heads), out.shape
    assert jnp.allclose(out, ref, rtol=1e-4, atol=1e-4), float(jnp.max(jnp.abs(out - ref)))
    print("KERNEL_OK")
</pallas_src>

<mosaic_0001>
module attributes {stable_mosaic.version = 11 : i64} {
  func.func @kernel(%arg0: i32, %arg1: memref<8x9xf32, #tpu.memory_space<vmem>>, %arg2: memref<9x256xf32, #tpu.memory_space<vmem>>, %arg3: memref<256x256xf32, #tpu.memory_space<vmem>>, %arg4: memref<1x256xf32, #tpu.memory_space<vmem>>, %arg5: memref<256x64xf32, #tpu.memory_space<vmem>>, %arg6: memref<1x64xf32, #tpu.memory_space<vmem>>, %arg7: memref<8x64xf32, #tpu.memory_space<vmem>>) attributes {dimension_semantics = [#tpu.dimension_semantics<parallel>], iteration_bounds = array<i64: 1>, scalar_prefetch = 0 : i64, scratch_operands = 0 : i64, tpu.core_type = #tpu.core_type<tc>, window_params = [{transform_indices = @transform_0, window_bounds = array<i64: 8, 9>}, {pipeline_mode = #tpu.pipeline_mode<synchronous>, transform_indices = @transform_1, window_bounds = array<i64: 9, 256>}, {pipeline_mode = #tpu.pipeline_mode<synchronous>, transform_indices = @transform_2, window_bounds = array<i64: 256, 256>}, {pipeline_mode = #tpu.pipeline_mode<synchronous>, transform_indices = @transform_3, window_bounds = array<i64: 1, 256>}, {pipeline_mode = #tpu.pipeline_mode<synchronous>, transform_indices = @transform_4, window_bounds = array<i64: 256, 64>}, {pipeline_mode = #tpu.pipeline_mode<synchronous>, transform_indices = @transform_5, window_bounds = array<i64: 1, 64>}, {transform_indices = @transform_6, window_bounds = array<i64: 8, 64>}]} {
    %c0 = arith.constant 0 : index
    %c0_0 = arith.constant 0 : index
    %0 = vector.load %arg1[%c0, %c0_0] : memref<8x9xf32, #tpu.memory_space<vmem>>, vector<8x9xf32>
    %c0_1 = arith.constant 0 : index
    %c0_2 = arith.constant 0 : index
    %1 = vector.load %arg2[%c0_1, %c0_2] : memref<9x256xf32, #tpu.memory_space<vmem>>, vector<9x256xf32>
    %cst = arith.constant dense<0.000000e+00> : vector<8x256xf32>
    %2 = tpu.matmul %0, %1, %cst {dimension_numbers = #tpu.dot_dimension_numbers<[1], [0], [0], [1], [0, 0, 1, 1], [], []>} : vector<8x9xf32>, vector<9x256xf32>, vector<8x256xf32> -> vector<8x256xf32>
    %3 = arith.mulf %2, %2 : vector<8x256xf32>
    %cst_3 = arith.constant 0.000000e+00 : f32
    %4 = vector.broadcast %cst_3 : f32 to vector<8x256xf32>
    %5 = arith.subf %4, %3 : vector<8x256xf32>
    %6 = math.exp %5 : vector<8x256xf32>
    %c0_4 = arith.constant 0 : index
    %c0_5 = arith.constant 0 : index
    %7 = vector.load %arg3[%c0_4, %c0_5] : memref<256x256xf32, #tpu.memory_space<vmem>>, vector<256x256xf32>
    %cst_6 = arith.constant dense<0.000000e+00> : vector<8x256xf32>
    %8 = tpu.matmul %6, %7, %cst_6 {dimension_numbers = #tpu.dot_dimension_numbers<[1], [0], [0], [1], [0, 0, 1, 1], [], []>} : vector<8x256xf32>, vector<256x256xf32>, vector<8x256xf32> -> vector<8x256xf32>
    %c0_7 = arith.constant 0 : index
    %c0_8 = arith.constant 0 : index
    %9 = vector.load %arg4[%c0_7, %c0_8] : memref<1x256xf32, #tpu.memory_space<vmem>>, vector<1x256xf32>
    %10 = vector.broadcast %9 : vector<1x256xf32> to vector<8x256xf32>
    %11 = arith.addf %8, %10 : vector<8x256xf32>
    %cst_9 = arith.constant 5.000000e-01 : f32
    %12 = vector.broadcast %cst_9 : f32 to vector<8x256xf32>
    %13 = arith.mulf %12, %11 : vector<8x256xf32>
    %cst_10 = arith.constant 0.707106769 : f32
    %14 = vector.broadcast %cst_10 : f32 to vector<8x256xf32>
    %15 = arith.mulf %11, %14 : vector<8x256xf32>
    %16 = math.erf %15 : vector<8x256xf32>
    %cst_11 = arith.constant 1.000000e+00 : f32
    %17 = vector.broadcast %cst_11 : f32 to vector<8x256xf32>
    %18 = arith.addf %17, %16 : vector<8x256xf32>
    %19 = arith.mulf %13, %18 : vector<8x256xf32>
    %c0_12 = arith.constant 0 : index
    %c0_13 = arith.constant 0 : index
    %20 = vector.load %arg5[%c0_12, %c0_13] : memref<256x64xf32, #tpu.memory_space<vmem>>, vector<256x64xf32>
    %cst_14 = arith.constant dense<0.000000e+00> : vector<8x64xf32>
    %21 = tpu.matmul %19, %20, %cst_14 {dimension_numbers = #tpu.dot_dimension_numbers<[1], [0], [0], [1], [0, 0, 1, 1], [], []>} : vector<8x256xf32>, vector<256x64xf32>, vector<8x64xf32> -> vector<8x64xf32>
    %c0_15 = arith.constant 0 : index
    %c0_16 = arith.constant 0 : index
    %22 = vector.load %arg6[%c0_15, %c0_16] : memref<1x64xf32, #tpu.memory_space<vmem>>, vector<1x64xf32>
    %23 = vector.broadcast %22 : vector<1x64xf32> to vector<8x64xf32>
    %24 = arith.addf %21, %23 : vector<8x64xf32>
    %c0_17 = arith.constant 0 : index
    %c0_18 = arith.constant 0 : index
    %25 = vector.load %arg7[%c0_17, %c0_18] : memref<8x64xf32, #tpu.memory_space<vmem>>, vector<8x64xf32>
    tpu.vector_store %arg7[%c0_17, %c0_18], %24 {strides = array<i32>} : memref<8x64xf32, #tpu.memory_space<vmem>>, vector<8x64xf32>,
    return
  }
  func.func @transform_0(%arg0: i32) -> (i32, i32) {
    %c0_i32 = arith.constant 0 : i32
    %c0_i32_0 = arith.constant 0 : i32
    return %arg0, %c0_i32 : i32, i32
  }
  func.func @transform_1(%arg0: i32) -> (i32, i32) {
    %c0_i32 = arith.constant 0 : i32
    %c0_i32_0 = arith.constant 0 : i32
    %c0_i32_1 = arith.constant 0 : i32
    return %c0_i32, %c0_i32_0 : i32, i32
  }
  func.func @transform_2(%arg0: i32) -> (i32, i32) {
    %c0_i32 = arith.constant 0 : i32
    %c0_i32_0 = arith.constant 0 : i32
    %c0_i32_1 = arith.constant 0 : i32
    return %c0_i32, %c0_i32_0 : i32, i32
  }
  func.func @transform_3(%arg0: i32) -> (i32, i32) {
    %c0_i32 = arith.constant 0 : i32
    %c0_i32_0 = arith.constant 0 : i32
    %c0_i32_1 = arith.constant 0 : i32
    return %c0_i32, %c0_i32_0 : i32, i32
  }
  func.func @transform_4(%arg0: i32) -> (i32, i32) {
    %c0_i32 = arith.constant 0 : i32
    %c0_i32_0 = arith.constant 0 : i32
    %c0_i32_1 = arith.constant 0 : i32
    return %c0_i32, %c0_i32_0 : i32, i32
  }
  func.func @transform_5(%arg0: i32) -> (i32, i32) {
    %c0_i32 = arith.constant 0 : i32
    %c0_i32_0 = arith.constant 0 : i32
    %c0_i32_1 = arith.constant 0 : i32
    return %c0_i32, %c0_i32_0 : i32, i32
  }
  func.func @transform_6(%arg0: i32) -> (i32, i32) {
    %c0_i32 = arith.constant 0 : i32
    %c0_i32_0 = arith.constant 0 : i32
    return %arg0, %c0_i32 : i32, i32
  }
}

</mosaic_0001>

<llo_original>
// kernel: tpu_custom_call.1
$region0: #{tpu_custom_call.1}
  #allocation0 [shape = 'u32[]', space=smem, size = 0x4, offset = 0x4, fixed_abs, tag = 'smem constant byte address 0x4 - core index']
  #allocation1 [shape = 'u32[72,128]{1,0:T(1,128)}', space=vmem, size = 0x9000, scoped, tag = 'internal scratch']
  %s0 = inlined_call_operand.vmem [shape: f32[8,9], index: 0, kind: input, shape index: {}]
  %s1 = inlined_call_operand.vmem [shape: f32[9,256], index: 1, kind: input, shape index: {}]
  %s2 = inlined_call_operand.hbm [shape: f32[256,256], index: 2, kind: input, shape index: {}]
  %s3 = inlined_call_operand.vmem [shape: f32[1,256], index: 3, kind: input, shape index: {}]
  %s4 = inlined_call_operand.vmem [shape: f32[256,64], index: 4, kind: input, shape index: {}]
  %s5 = inlined_call_operand.vmem [shape: f32[1,64], index: 5, kind: input, shape index: {}]
  %s6 = inlined_call_operand.hbm [shape: f32[8,64], index: 6, kind: output, shape index: {}]
  %s7 = sld [smem:[#allocation0]]
  $region38: #{tpu_custom_call.1} parent=0
    _
  %s9 = ssub.s32 1, %s7
  %s10 = scalar_select 0, %s9, %s7
  $region1: #{tpu_custom_call.1} parent=0
    #allocation2 [shape = 'u8[262144]{0}', space=vmem, size = 0x40000, scoped, tag = 'input window, operand 2, single buffered']
    #allocation3 [shape = 's32[1]{0}', space=sflag, size = 0x4, scoped, tag = 'scoped memory for tpu_custom_call.1']
    #allocation4 [shape = 's32[1]{0}', space=sflag, size = 0x4, scoped, tag = 'scoped memory for tpu_custom_call.1']
    #allocation5 [shape = 'u8[4096]{0}', space=vmem, size = 0x1000, scoped, tag = 'output window, operand 0, single buffered']
    %11 = vsyncpa [#allocation3], 0
    %12 = vsyncpa [#allocation4], 0
    // Predicated region
    $region2: #{tpu_custom_call.1} parent=1 // pred_check
      _
    $region3: #{tpu_custom_call.1} parent=1 // pred_check_branch
      %14 = sbr.rel (0) target = $region5
    $region4: #{tpu_custom_call.1} parent=1 // pred_region
      _
    $region5: #{tpu_custom_call.1} parent=1 // pred_fallthru
      _
    // Predicated region
    $region6: #{tpu_custom_call.1} parent=1 // pred_check
      _
    $region7: #{tpu_custom_call.1} parent=1 // pred_check_branch
      %16 = sbr.rel (0) target = $region9
    $region8: #{tpu_custom_call.1} parent=1 // pred_region
      _
    $region9: #{tpu_custom_call.1} parent=1 // pred_fallthru
      _
    // Predicated region
    $region10: #{tpu_custom_call.1} parent=1 // pred_check
      _
    $region11: #{tpu_custom_call.1} parent=1 // pred_check_branch
      %18 = sbr.rel (0) target = $region13
    $region12: #{tpu_custom_call.1} parent=1 // pred_region
      %20 = vsyncadd [#allocation3], 0
      %s21 = sshll.u32 %s2, 4
      %s22 = int_to_ptr.hbm [resolvable:$true] %s21
      %s23 = sshll.u32 [#allocation2], 4
      %s24 = int_to_ptr.vmem [resolvable:$true] %s23
      %29 = dma.hbm_to_vmem [thread:$0]  %s22, 8192, %s24, [#allocation3], 256, 256, 16
    $region13: #{tpu_custom_call.1} parent=1 // pred_fallthru
      _
    // Predicated region
    $region14: #{tpu_custom_call.1} parent=1 // pred_check
      _
    $region15: #{tpu_custom_call.1} parent=1 // pred_check_branch
      %31 = sbr.rel (0) target = $region17
    $region16: #{tpu_custom_call.1} parent=1 // pred_region
      _
    $region17: #{tpu_custom_call.1} parent=1 // pred_fallthru
      _
    // Predicated region
    $region18: #{tpu_custom_call.1} parent=1 // pred_check
      _
    $region19: #{tpu_custom_call.1} parent=1 // pred_check_branch
      %33 = sbr.rel (0) target = $region21
    $region20: #{tpu_custom_call.1} parent=1 // pred_region
      _
    $region21: #{tpu_custom_call.1} parent=1 // pred_fallthru
      _
    // Predicated region
    $region22: #{tpu_custom_call.1} parent=1 // pred_check
      _
    $region23: #{tpu_custom_call.1} parent=1 // pred_check_branch
      %35 = sbr.rel (0) target = $region25
    $region24: #{tpu_custom_call.1} parent=1 // pred_region
      _
    $region25: #{tpu_custom_call.1} parent=1 // pred_fallthru
      _
    // Predicated region
    $region26: #{tpu_custom_call.1} parent=1 // pred_check
      _
    $region27: #{tpu_custom_call.1} parent=1 // pred_check_branch
      %37 = sbr.rel (0) target = $region29
    $region28: #{tpu_custom_call.1} parent=1 // pred_region
      %39 = dma.done [#allocation3], 8192
    $region29: #{tpu_custom_call.1} parent=1 // pred_fallthru
      _
    %v40 = vld [vmem:[%s0] sm:$0xff]
    %v41 = vld [vmem:[%s1] sm:$0xff]
    %v42 = vld [vmem:[%s1 + $0x8] sm:$0xff]
    %v43 = vld [vmem:[%s1 + $0x10] sm:$0x1]
    %v44 = vld [vmem:[%s1 + $0x18] sm:$0x1]
    %vm45 = vcmask 72704
    %v47 = vsel %vm45, %v40, 0
    %vm49 = vcmask 1040384
    %v51 = vsel %vm49, %v43, 0
    %v54 = vsel %vm49, %v44, 0
    %56 = vmatpush.msra.mxu0 0.0
    %57 = vmatpush.msra.mxu0 0.0
    %58 = vmatpush.msra.mxu0 0.0
    %59 = vmatpush.msra.mxu0 0.0
    %60 = vmatpush.msra.mxu0 0.0
    %61 = vmatpush.msra.mxu0 0.0
    %62 = vmatpush.msra.mxu0 0.0
    %63 = vmatpush.msra.mxu0 0.0
    %64 = vmatpush.msra.mxu0 0.0
    %65 = vmatpush.msra.mxu0 0.0
    %66 = vmatpush.msra.mxu0 0.0
    %67 = vmatpush.msra.mxu0 0.0
    %68 = vmatpush.msra.mxu0 0.0
    %69 = vmatpush.msra.mxu0 0.0
    %70 = vmatpush.msra.mxu0 %v51
    %71 = vmatpush.msra.mxu0 %v41
    %72 = vmatmul.f32.gmra.mxu0 %v47
    %v73 = vpop.f32.mrf.mxu0
    %v74 = vadd.f32 0.0, %v73
    %75 = vdwg.mxu0
    %76 = vmatpush.msra.mxu0 0.0
    %77 = vmatpush.msra.mxu0 0.0
    %78 = vmatpush.msra.mxu0 0.0
    %79 = vmatpush.msra.mxu0 0.0
    %80 = vmatpush.msra.mxu0 0.0
    %81 = vmatpush.msra.mxu0 0.0
    %82 = vmatpush.msra.mxu0 0.0
    %83 = vmatpush.msra.mxu0 0.0
    %84 = vmatpush.msra.mxu0 0.0
    %85 = vmatpush.msra.mxu0 0.0
    %86 = vmatpush.msra.mxu0 0.0
    %87 = vmatpush.msra.mxu0 0.0
    %88 = vmatpush.msra.mxu0 0.0
    %89 = vmatpush.msra.mxu0 0.0
    %90 = vmatpush.msra.mxu0 %v54
    %91 = vmatpush.msra.mxu0 %v42
    %92 = vmatmul.f32.gmra.mxu0 %v47
    %v93 = vpop.f32.mrf.mxu0
    %v94 = vadd.f32 0.0, %v93
    %95 = vdwg.mxu0
    %v96 = vmul.f32 %v74, %v74
    %v97 = vmul.f32 %v94, %v94
    %v98 = vsub.f32 0.0, %v96
    %v99 = vsub.f32 0.0, %v97
    %v100 = vmul.f32 %v98, 1.442695
    %v101 = vpow.pop %v100
    %v102 = vmul.f32 %v99, 1.442695
    %v103 = vpow.pop %v102
    %v104 = vld [vmem:[#allocation2] sm:$0xff]
    %v105 = vld [vmem:[#allocation2 + $0x8] sm:$0xff]
    %v106 = vld [vmem:[#allocation2 + $0x10] sm:$0xff]
    %v107 = vld [vmem:[#allocation2 + $0x18] sm:$0xff]
    %v108 = vld [vmem:[#allocation2 + $0x20] sm:$0xff]
    %v109 = vld [vmem:[#allocation2 + $0x28] sm:$0xff]
    %v110 = vld [vmem:[#allocation2 + $0x30] sm:$0xff]
    %v111 = vld [vmem:[#allocation2 + $0x38] sm:$0xff]
    %v112 = vld [vmem:[#allocation2 + $0x40] sm:$0xff]
    %v113 = vld [vmem:[#allocation2 + $0x48] sm:$0xff]
    %v114 = vld [vmem:[#allocation2 + $0x50] sm:$0xff]
    %v115 = vld [vmem:[#allocation2 + $0x58] sm:$0xff]
    %v116 = vld [vmem:[#allocation2 + $0x60] sm:$0xff]
    %v117 = vld [vmem:[#allocation2 + $0x68] sm:$0xff]
    %v118 = vld [vmem:[#allocation2 + $0x70] sm:$0xff]
    %v119 = vld [vmem:[#allocation2 + $0x78] sm:$0xff]
    %v120 = vld [vmem:[#allocation2 + $0x80] sm:$0xff]
    %v121 = vld [vmem:[#allocation2 + $0x88] sm:$0xff]
    %v122 = vld [vmem:[#allocation2 + $0x90] sm:$0xff]
    %v123 = vld [vmem:[#allocation2 + $0x98] sm:$0xff]
    %v124 = vld [vmem:[#allocation2 + $0xa0] sm:$0xff]
    %v125 = vld [vmem:[#allocation2 + $0xa8] sm:$0xff]
    %v126 = vld [vmem:[#allocation2 + $0xb0] sm:$0xff]
    %v127 = vld [vmem:[#allocation2 + $0xb8] sm:$0xff]
    %v128 = vld [vmem:[#allocation2 + $0xc0] sm:$0xff]
    %v129 = vld [vmem:[#allocation2 + $0xc8] sm:$0xff]
    %v130 = vld [vmem:[#allocation2 + $0xd0] sm:$0xff]
    %v131 = vld [vmem:[#allocation2 + $0xd8] sm:$0xff]
    %v132 = vld [vmem:[#allocation2 + $0xe0] sm:$0xff]
    %v133 = vld [vmem:[#allocation2 + $0xe8] sm:$0xff]
    %v134 = vld [vmem:[#allocation2 + $0xf0] sm:$0xff]
    %v135 = vld [vmem:[#allocation2 + $0xf8] sm:$0xff]
    %v136 = vld [vmem:[#allocation2 + $0x100] sm:$0xff]
    %v137 = vld [vmem:[#allocation2 + $0x108] sm:$0xff]
    %v138 = vld [vmem:[#allocation2 + $0x110] sm:$0xff]
    %v139 = vld [vmem:[#allocation2 + $0x118] sm:$0xff]
    %v140 = vld [vmem:[#allocation2 + $0x120] sm:$0xff]
    %v141 = vld [vmem:[#allocation2 + $0x128] sm:$0xff]
    %v142 = vld [vmem:[#allocation2 + $0x130] sm:$0xff]
    %v143 = vld [vmem:[#allocation2 + $0x138] sm:$0xff]
    %v144 = vld [vmem:[#allocation2 + $0x140] sm:$0xff]
    %v145 = vld [vmem:[#allocation2 + $0x148] sm:$0xff]
    %v146 = vld [vmem:[#allocation2 + $0x150] sm:$0xff]
    %v147 = vld [vmem:[#allocation2 + $0x158] sm:$0xff]
    %v148 = vld [vmem:[#allocation2 + $0x160] sm:$0xff]
    %v149 = vld [vmem:[#allocation2 + $0x168] sm:$0xff]
    %v150 = vld [vmem:[#allocation2 + $0x170] sm:$0xff]
    %v151 = vld [vmem:[#allocation2 + $0x178] sm:$0xff]
    %v152 = vld [vmem:[#allocation2 + $0x180] sm:$0xff]
    %v153 = vld [vmem:[#allocation2 + $0x188] sm:$0xff]
    %v154 = vld [vmem:[#allocation2 + $0x190] sm:$0xff]
    %v155 = vld [vmem:[#allocation2 + $0x198] sm:$0xff]
    %v156 = vld [vmem:[#allocation2 + $0x1a0] sm:$0xff]
    %v157 = vld [vmem:[#allocation2 + $0x1a8] sm:$0xff]
    %v158 = vld [vmem:[#allocation2 + $0x1b0] sm:$0xff]
    %v159 = vld [vmem:[#allocation2 + $0x1b8] sm:$0xff]
    %v160 = vld [vmem:[#allocation2 + $0x1c0] sm:$0xff]
    %v161 = vld [vmem:[#allocation2 + $0x1c8] sm:$0xff]
    %v162 = vld [vmem:[#allocation2 + $0x1d0] sm:$0xff]
    %v163 = vld [vmem:[#allocation2 + $0x1d8] sm:$0xff]
    %v164 = vld [vmem:[#allocation2 + $0x1e0] sm:$0xff]
    %v165 = vld [vmem:[#allocation2 + $0x1e8] sm:$0xff]
    %v166 = vld [vmem:[#allocation2 + $0x1f0] sm:$0xff]
    %v167 = vld [vmem:[#allocation2 + $0x1f8] sm:$0xff]
    %v168 = vld [vmem:[%s3] sm:$0x3]
    %v170 = vperm.slane %v168, 0
    %v171 = vperm.slane %v168, 1
    %174 = vmatpush.msra.mxu0 %v134
    %175 = vmatpush.msra.mxu0 %v132
    %176 = vmatpush.msra.mxu0 %v130
    %177 = vmatpush.msra.mxu0 %v128
    %178 = vmatpush.msra.mxu0 %v126
    %179 = vmatpush.msra.mxu0 %v124
    %180 = vmatpush.msra.mxu0 %v122
    %181 = vmatpush.msra.mxu0 %v120
    %182 = vmatpush.msra.mxu0 %v118
    %183 = vmatpush.msra.mxu0 %v116
    %184 = vmatpush.msra.mxu0 %v114
    %185 = vmatpush.msra.mxu0 %v112
    %186 = vmatpush.msra.mxu0 %v110
    %187 = vmatpush.msra.mxu0 %v108
    %188 = vmatpush.msra.mxu0 %v106
    %189 = vmatpush.msra.mxu0 %v104
    %190 = vmatmul.f32.gmra.mxu0 %v101
    %v191 = vpop.f32.mrf.mxu0
    %v192 = vadd.f32 %v170, %v191
    %193 = vdwg.mxu0
    %194 = vmatpush.msra.mxu0 %v166
    %195 = vmatpush.msra.mxu0 %v164
    %196 = vmatpush.msra.mxu0 %v162
    %197 = vmatpush.msra.mxu0 %v160
    %198 = vmatpush.msra.mxu0 %v158
    %199 = vmatpush.msra.mxu0 %v156
    %200 = vmatpush.msra.mxu0 %v154
    %201 = vmatpush.msra.mxu0 %v152
    %202 = vmatpush.msra.mxu0 %v150
    %203 = vmatpush.msra.mxu0 %v148
    %204 = vmatpush.msra.mxu0 %v146
    %205 = vmatpush.msra.mxu0 %v144
    %206 = vmatpush.msra.mxu0 %v142
    %207 = vmatpush.msra.mxu0 %v140
    %208 = vmatpush.msra.mxu0 %v138
    %209 = vmatpush.msra.mxu0 %v136
    %210 = vmatmul.f32.gmra.mxu0 %v103
    %v211 = vpop.f32.mrf.mxu0
    %v212 = vadd.f32 %v192, %v211
    %213 = vdwg.mxu0
    %214 = vmatpush.msra.mxu0 %v135
    %215 = vmatpush.msra.mxu0 %v133
    %216 = vmatpush.msra.mxu0 %v131
    %217 = vmatpush.msra.mxu0 %v129
    %218 = vmatpush.msra.mxu0 %v127
    %219 = vmatpush.msra.mxu0 %v125
    %220 = vmatpush.msra.mxu0 %v123
    %221 = vmatpush.msra.mxu0 %v121
    %222 = vmatpush.msra.mxu0 %v119
    %223 = vmatpush.msra.mxu0 %v117
    %224 = vmatpush.msra.mxu0 %v115
    %225 = vmatpush.msra.mxu0 %v113
    %226 = vmatpush.msra.mxu0 %v111
    %227 = vmatpush.msra.mxu0 %v109
    %228 = vmatpush.msra.mxu0 %v107
    %229 = vmatpush.msra.mxu0 %v105
    %230 = vmatmul.f32.gmra.mxu0 %v101
    %v231 = vpop.f32.mrf.mxu0
    %v232 = vadd.f32 %v171, %v231
    %233 = vdwg.mxu0
    %234 = vmatpush.msra.mxu0 %v167
    %235 = vmatpush.msra.mxu0 %v165
    %236 = vmatpush.msra.mxu0 %v163
    %237 = vmatpush.msra.mxu0 %v161
    %238 = vmatpush.msra.mxu0 %v159
    %239 = vmatpush.msra.mxu0 %v157
    %240 = vmatpush.msra.mxu0 %v155
    %241 = vmatpush.msra.mxu0 %v153
    %242 = vmatpush.msra.mxu0 %v151
    %243 = vmatpush.msra.mxu0 %v149
    %244 = vmatpush.msra.mxu0 %v147
    %245 = vmatpush.msra.mxu0 %v145
    %246 = vmatpush.msra.mxu0 %v143
    %247 = vmatpush.msra.mxu0 %v141
    %248 = vmatpush.msra.mxu0 %v139
    %249 = vmatpush.msra.mxu0 %v137
    %250 = vmatmul.f32.gmra.mxu0 %v103
    %v251 = vpop.f32.mrf.mxu0
    %v252 = vadd.f32 %v232, %v251
    %253 = vdwg.mxu0
    %v254 = vmul.f32 %v212, 0.5
    %v255 = vmul.f32 %v252, 0.5
    %v256 = vmul.f32 %v212, 0.70710677
    %v257 = vmul.f32 %v252, 0.70710677
    %v258 = vmul.f32 %v256, %v256
    %v259 = vmin.f32 16.0, %v258
    %v260 = vmul.f32 %v259, 2.1237322e-06
    %v261 = vadd.f32 %v260, 0.00028619796
    %v262 = vmul.f32 %v259, %v261
    %v263 = vadd.f32 %v262, 0.0036580483
    %v264 = vmul.f32 %v259, %v263
    %v265 = vadd.f32 %v264, 0.05243302
    %v266 = vmul.f32 %v259, %v265
    %v267 = vadd.f32 %v266, 0.18741608
    %v268 = vmul.f32 %v259, %v267
    %v269 = vadd.f32 %v268, 1.1283791
    %v270 = vmul.f32 %v256, %v269
    %v271 = vmul.f32 %v259, 3.8918573e-05
    %v272 = vadd.f32 %v271, 0.001143296
    %v273 = vmul.f32 %v259, %v272
    %v274 = vadd.f32 %v273, 0.014752088
    %v275 = vmul.f32 %v259, %v274
    %v276 = vadd.f32 %v275, 0.112945676
    %v277 = vmul.f32 %v259, %v276
    %v278 = vadd.f32 %v277, 0.4994258
    %v279 = vmul.f32 %v259, %v278
    %v280 = vadd.f32 %v279, 1.0
    %v281 = vrcp.pop %v280
    %v282 = vmul.f32 %v280, %v281
    %v283 = vsub.f32 1.0, %v282
    %v284 = vmul.f32 %v281, %v283
    %v285 = vadd.f32 %v281, %v284
    %vm286 = vweird.f32 %v280
    %vm287 = vweird.f32 %v281
    %vm288 = vmor %vm286, %vm287
    %v289 = vsel %vm288, %v281, %v285
    %v290 = vand.u32 2147483647, %v280
    %vm291 = vcmp.eq.f32.partialorder %v290, 8.507059e+37
    %v292 = vand.u32 %v280, 2147483648
    %v293 = vor.u32 1.1754944e-38, %v292
    %v294 = vsel %vm291, %v293, %v289
    %v295 = vmul.f32 %v270, %v294
    %v296 = vmin.f32 %v295, 1.0
    %v297 = vmax.f32 %v296, -1.0
    %v298 = vmul.f32 %v257, %v257
    %v299 = vmin.f32 16.0, %v298
    %v300 = vmul.f32 %v299, 2.1237322e-06
    %v301 = vadd.f32 %v300, 0.00028619796
    %v302 = vmul.f32 %v299, %v301
    %v303 = vadd.f32 %v302, 0.0036580483
    %v304 = vmul.f32 %v299, %v303
    %v305 = vadd.f32 %v304, 0.05243302
    %v306 = vmul.f32 %v299, %v305
    %v307 = vadd.f32 %v306, 0.18741608
    %v308 = vmul.f32 %v299, %v307
    %v309 = vadd.f32 %v308, 1.1283791
    %v310 = vmul.f32 %v257, %v309
    %v311 = vmul.f32 %v299, 3.8918573e-05
    %v312 = vadd.f32 %v311, 0.001143296
    %v313 = vmul.f32 %v299, %v312
    %v314 = vadd.f32 %v313, 0.014752088
    %v315 = vmul.f32 %v299, %v314
    %v316 = vadd.f32 %v315, 0.112945676
    %v317 = vmul.f32 %v299, %v316
    %v318 = vadd.f32 %v317, 0.4994258
    %v319 = vmul.f32 %v299, %v318
    %v320 = vadd.f32 %v319, 1.0
    %v321 = vrcp.pop %v320
    %v322 = vmul.f32 %v320, %v321
    %v323 = vsub.f32 1.0, %v322
    %v324 = vmul.f32 %v321, %v323
    %v325 = vadd.f32 %v321, %v324
    %vm326 = vweird.f32 %v320
    %vm327 = vweird.f32 %v321
    %vm328 = vmor %vm326, %vm327
    %v329 = vsel %vm328, %v321, %v325
    %v330 = vand.u32 2147483647, %v320
    %vm331 = vcmp.eq.f32.partialorder %v330, 8.507059e+37
    %v332 = vand.u32 %v320, 2147483648
    %v333 = vor.u32 1.1754944e-38, %v332
    %v334 = vsel %vm331, %v333, %v329
    %v335 = vmul.f32 %v310, %v334
    %v336 = vmin.f32 %v335, 1.0
    %v337 = vmax.f32 %v336, -1.0
    %v338 = vadd.f32 %v297, 1.0
    %v339 = vadd.f32 %v337, 1.0
    %v340 = vmul.f32 %v254, %v338
    %v341 = vmul.f32 %v255, %v339
    %v342 = vld [vmem:[%s4] sm:$0xff]
    %v343 = vld [vmem:[%s4 + $0x8] sm:$0xff]
    %v344 = vld [vmem:[%s4 + $0x10] sm:$0xff]
    %v345 = vld [vmem:[%s4 + $0x18] sm:$0xff]
    %v346 = vld [vmem:[%s4 + $0x20] sm:$0xff]
    %v347 = vld [vmem:[%s4 + $0x28] sm:$0xff]
    %v348 = vld [vmem:[%s4 + $0x30] sm:$0xff]
    %v349 = vld [vmem:[%s4 + $0x38] sm:$0xff]
    %v350 = vld [vmem:[%s4 + $0x40] sm:$0xff]
    %v351 = vld [vmem:[%s4 + $0x48] sm:$0xff]
    %v352 = vld [vmem:[%s4 + $0x50] sm:$0xff]
    %v353 = vld [vmem:[%s4 + $0x58] sm:$0xff]
    %v354 = vld [vmem:[%s4 + $0x60] sm:$0xff]
    %v355 = vld [vmem:[%s4 + $0x68] sm:$0xff]
    %v356 = vld [vmem:[%s4 + $0x70] sm:$0xff]
    %v357 = vld [vmem:[%s4 + $0x78] sm:$0xff]
    %v358 = vld [vmem:[%s4 + $0x80] sm:$0xff]
    %v359 = vld [vmem:[%s4 + $0x88] sm:$0xff]
    %v360 = vld [vmem:[%s4 + $0x90] sm:$0xff]
    %v361 = vld [vmem:[%s4 + $0x98] sm:$0xff]
    %v362 = vld [vmem:[%s4 + $0xa0] sm:$0xff]
    %v363 = vld [vmem:[%s4 + $0xa8] sm:$0xff]
    %v364 = vld [vmem:[%s4 + $0xb0] sm:$0xff]
    %v365 = vld [vmem:[%s4 + $0xb8] sm:$0xff]
    %v366 = vld [vmem:[%s4 + $0xc0] sm:$0xff]
    %v367 = vld [vmem:[%s4 + $0xc8] sm:$0xff]
    %v368 = vld [vmem:[%s4 + $0xd0] sm:$0xff]
    %v369 = vld [vmem:[%s4 + $0xd8] sm:$0xff]
    %v370 = vld [vmem:[%s4 + $0xe0] sm:$0xff]
    %v371 = vld [vmem:[%s4 + $0xe8] sm:$0xff]
    %v372 = vld [vmem:[%s4 + $0xf0] sm:$0xff]
    %v373 = vld [vmem:[%s4 + $0xf8] sm:$0xff]
    %v374 = vld [vmem:[%s5] sm:$0x1]
    %v376 = vperm.slane %v374, 0
    %378 = vmatpush.msra.mxu0 %v357
    %379 = vmatpush.msra.mxu0 %v356
    %380 = vmatpush.msra.mxu0 %v355
    %381 = vmatpush.msra.mxu0 %v354
    %382 = vmatpush.msra.mxu0 %v353
    %383 = vmatpush.msra.mxu0 %v352
    %384 = vmatpush.msra.mxu0 %v351
    %385 = vmatpush.msra.mxu0 %v350
    %386 = vmatpush.msra.mxu0 %v349
    %387 = vmatpush.msra.mxu0 %v348
    %388 = vmatpush.msra.mxu0 %v347
    %389 = vmatpush.msra.mxu0 %v346
    %390 = vmatpush.msra.mxu0 %v345
    %391 = vmatpush.msra.mxu0 %v344
    %392 = vmatpush.msra.mxu0 %v343
    %393 = vmatpush.msra.mxu0 %v342
    %394 = vmatmul.f32.gmra.mxu0 %v340
    %v395 = vpop.f32.mrf.mxu0
    %v396 = vadd.f32 %v376, %v395
    %397 = vdwg.mxu0
    %398 = vmatpush.msra.mxu0 %v373
    %399 = vmatpush.msra.mxu0 %v372
    %400 = vmatpush.msra.mxu0 %v371
    %401 = vmatpush.msra.mxu0 %v370
    %402 = vmatpush.msra.mxu0 %v369
    %403 = vmatpush.msra.mxu0 %v368
    %404 = vmatpush.msra.mxu0 %v367
    %405 = vmatpush.msra.mxu0 %v366
    %406 = vmatpush.msra.mxu0 %v365
    %407 = vmatpush.msra.mxu0 %v364
    %408 = vmatpush.msra.mxu0 %v363
    %409 = vmatpush.msra.mxu0 %v362
    %410 = vmatpush.msra.mxu0 %v361
    %411 = vmatpush.msra.mxu0 %v360
    %412 = vmatpush.msra.mxu0 %v359
    %413 = vmatpush.msra.mxu0 %v358
    %414 = vmatmul.f32.gmra.mxu0 %v341
    %v415 = vpop.f32.mrf.mxu0
    %v416 = vadd.f32 %v396, %v415
    %417 = vdwg.mxu0
    %vm418 = vcmask 523264
    %419 = vst.msk [vmem:[#allocation5] sm:$0xff] %vm418, %v416
    // Predicated region
    $region30: #{tpu_custom_call.1} parent=1 // pred_check
      _
    $region31: #{tpu_custom_call.1} parent=1 // pred_check_branch
      %421 = sbr.rel (0) target = $region33
    $region32: #{tpu_custom_call.1} parent=1 // pred_region
      %423 = vsyncadd [#allocation4], 0
      %s425 = sshll.u32 [#allocation5], 4
      %s426 = int_to_ptr.vmem [resolvable:$true] %s425
      %s427 = sshll.u32 %s6, 4
      %s428 = int_to_ptr.hbm [resolvable:$true] %s427
      %430 = dma.vmem_to_hbm [thread:$0]  %s426, 128, %s428, [#allocation4]
    $region33: #{tpu_custom_call.1} parent=1 // pred_fallthru
      _
    // Predicated region
    $region34: #{tpu_custom_call.1} parent=1 // pred_check
      _
    $region35: #{tpu_custom_call.1} parent=1 // pred_check_branch
      %432 = sbr.rel (0) target = $region37
    $region36: #{tpu_custom_call.1} parent=1 // pred_region
      %434 = dma.done [#allocation4], 128
    $region37: #{tpu_custom_call.1} parent=1 // pred_fallthru
      _
    %435 = vsyncpa [#allocation3], 1
    %436 = vsyncpa [#allocation4], 1

</llo_original>
